<compile_context>
chip_gen: v5e
topology: v5e:2x2
jax: 0.10.0
libtpu: 0.0.40
codegen_flags: <defaults>
</compile_context>

<pallas_src>
import math
import functools

import jax
import jax.numpy as jnp
from jax.experimental import pallas as pl
from jax.experimental.pallas import tpu as pltpu


def _mha_kernel(x_ref, pe_ref, wqkv_ref, bqkv_ref, wo_ref, bo_ref,
                o_ref, xt_ref, qkv_ref, attn_ref, *, num_heads: int):
    # x_ref / o_ref block: (nb, D, L)  channels-first, like the PyTorch module.
    # pe_ref:   (D, L)   positional encoding (f32).
    # wqkv_ref: (D, 3D)  fused [Wq*scale | Wk | Wv], (in, out) layout, bf16.
    # bqkv_ref: (1, 3D)  fused biases (bq already scaled), f32.
    # wo_ref:   (D, D)   out_linear weight, (in, out) layout, bf16.
    # bo_ref:   (1, D)   f32.
    # xt_ref:   (nb*L, D)   bf16 scratch — token-major activations (x + pe).
    # qkv_ref:  (nb*L, 3D)  bf16 scratch — fused QKV projection output.
    # attn_ref: (nb*L, D)   bf16 scratch — per-head attention output slab.
    nb, D, L = x_ref.shape
    H = num_heads
    Dh = D // H

    # 1) Positional encoding (channels-first, f32) then one vectorized
    #    (nb, D, L) -> (nb, L, D) transpose, flattened to a (nb*L, D) bf16 slab.
    x_pe = (x_ref[...] + pe_ref[...][None, :, :]).astype(jnp.bfloat16)
    xt_ref[...] = jnp.transpose(x_pe, (0, 2, 1)).reshape(nb * L, D)

    # 2) Fused Q|K|V projection: one bf16 matmul with M = nb*L rows,
    #    f32 accumulation + bias, result parked in VMEM scratch.
    qkv = jnp.dot(xt_ref[...], wqkv_ref[...],
                  preferred_element_type=jnp.float32) + bqkv_ref[...]
    qkv_ref[...] = qkv.astype(jnp.bfloat16)

    # 3) Attention, batched over the packed batch dim per head.  The
    #    1/sqrt(Dh) scale is folded into Wq/bq in the wrapper.  Each head does
    #    three lane-slice reads, two batched matmuls (NT score matmul — no
    #    explicit transpose of K), and one slab store.
    for h in range(H):
        c = h * Dh
        qh = qkv_ref[:, c:c + Dh].reshape(nb, L, Dh)                # bf16
        kh = qkv_ref[:, D + c:D + c + Dh].reshape(nb, L, Dh)        # bf16
        vh = qkv_ref[:, 2 * D + c:2 * D + c + Dh].reshape(nb, L, Dh)

        s = jnp.einsum('bqd,bkd->bqk', qh, kh,
                       preferred_element_type=jnp.float32)          # (nb, L, L)
        s = s - jnp.max(s, axis=-1, keepdims=True)
        p = jnp.exp(s)
        denom = jnp.sum(p, axis=-1, keepdims=True)
        r = pl.reciprocal(denom, approx=True)          # EUP slot
        r = r * (2.0 - denom * r)                      # one Newton step -> ~f32 exact
        p = p * r

        oh = jnp.einsum('bqk,bkd->bqd', p.astype(jnp.bfloat16), vh,
                        preferred_element_type=jnp.float32)         # (nb, L, Dh)
        attn_ref[:, c:c + Dh] = oh.reshape(nb * L, Dh).astype(jnp.bfloat16)

    # 4) Output projection (bf16 operands, f32 accumulation) and a single
    #    vectorized transpose back into the module's (nb, D, L) layout.
    out = jnp.dot(attn_ref[...], wo_ref[...],
                  preferred_element_type=jnp.float32) + bo_ref[...]
    o_ref[...] = jnp.transpose(out.reshape(nb, L, D), (0, 2, 1)).astype(o_ref.dtype)


def make_positional_encoding(L, d_model, dtype=jnp.float32):
    # Matches PyTorch exactly, already in the (D, L) channels-first layout:
    #   pe[0::2, :] = sin(pos * denom), pe[1::2, :] = cos(pos * denom)
    pos = jnp.arange(L, dtype=dtype)[None, :]                       # (1, L)
    denom = jnp.exp(jnp.arange(0, d_model, 2, dtype=dtype)
                    * (-math.log(10000.0) / d_model))[:, None]      # (D/2, 1)
    ang = denom * pos                                               # (D/2, L)
    pe = jnp.zeros((d_model, L), dtype=dtype)
    pe = pe.at[0::2, :].set(jnp.sin(ang))
    pe = pe.at[1::2, :].set(jnp.cos(ang))
    return pe


def _choose_nb(B, L):
    # Pack enough batch elements per grid step that the projection matmuls see
    # M = nb*L ~ 512 rows (fills the 256-wide MXU on v6e/v7x and amortizes the
    # ~0.35us per-step overhead), but keep the grid extent >= 2 when B allows
    # so megacore / v7x's two TensorCores both get a step to execute.
    nb = min(B, max(1, 512 // max(L, 1)), 16)
    if B >= 2:
        nb = min(nb, max(1, B // 2))
    # NOTE: for prime B this degrades toward nb=1 — still correct, just less
    # M-dim packing; pad B upstream if that becomes a measured perf cliff.
    while B % nb != 0:
        nb -= 1
    return max(nb, 1)


def mha_pallas(x, params, num_heads):
    """x: (B, d_model, L) float32. Returns (B, d_model, L) like the PyTorch module."""
    B, D, L = x.shape
    Dh = D // num_heads
    scale = 1.0 / math.sqrt(float(Dh))

    pe = make_positional_encoding(L, D, jnp.float32)                # (D, L)

    # PyTorch Linear stores W as (out, in); the kernel computes x_t @ W_io with
    # W_io = W.T.  Fuse Q|K|V into one (D, 3D) weight / (1, 3D) bias, fold the
    # attention scale into the Q projection, and cast weights to bf16 for the MXU.
    wqkv = jnp.concatenate(
        [params["wq"].T * scale, params["wk"].T, params["wv"].T],
        axis=1).astype(jnp.bfloat16)
    bqkv = jnp.concatenate(
        [params["bq"] * scale, params["bk"], params["bv"]]
    ).reshape(1, 3 * D).astype(jnp.float32)
    wo = params["wo"].T.astype(jnp.bfloat16)
    bo = params["bo"].reshape(1, D).astype(jnp.float32)

    nb = _choose_nb(B, L)

    # Explicit VMEM budget: v5e's default scoped limit is 16 MiB (128 MiB
    # physical) and v7x only has 64 MiB physical, so size the limit from the
    # actual footprint with 2x headroom instead of relying on the default.
    f32b, bf16b = 4, 2
    est = ((3 * D * D + D * D) * bf16b + 4 * D * f32b            # weights + biases
           + 2 * 2 * nb * D * L * f32b + 2 * D * L * f32b        # x/out blocks (dbl-buffered) + pe
           + nb * L * (5 * D) * bf16b                            # xt + qkv + attn scratch
           + nb * L * L * f32b * 4 + nb * L * 3 * D * f32b)      # live softmax / projection temps
    vmem_limit = int(min(max(2 * est, 32 * 1024 * 1024), 128 * 1024 * 1024))

    full2d = lambda i: (0, 0)
    per_blk = lambda i: (i, 0, 0)

    out = pl.pallas_call(
        functools.partial(_mha_kernel, num_heads=num_heads),
        out_shape=jax.ShapeDtypeStruct((B, D, L), x.dtype),
        grid_spec=pltpu.PrefetchScalarGridSpec(
            num_scalar_prefetch=0,
            grid=(B // nb,),
            in_specs=[
                pl.BlockSpec((nb, D, L), per_blk),        # x (channels-first)
                pl.BlockSpec((D, L), full2d),             # positional encoding
                pl.BlockSpec((D, 3 * D), full2d),         # fused Wqkv (bf16, in x out)
                pl.BlockSpec((1, 3 * D), full2d),         # fused bqkv (f32)
                pl.BlockSpec((D, D), full2d),             # Wo (bf16, in x out)
                pl.BlockSpec((1, D), full2d),             # bo (f32)
            ],
            out_specs=pl.BlockSpec((nb, D, L), per_blk),  # channels-first out
            scratch_shapes=[
                pltpu.VMEM((nb * L, D), jnp.bfloat16),        # token-major x (+pe)
                pltpu.VMEM((nb * L, 3 * D), jnp.bfloat16),    # fused QKV slab
                pltpu.VMEM((nb * L, D), jnp.bfloat16),        # attention output slab
            ]),
        compiler_params=pltpu.CompilerParams(
            dimension_semantics=("parallel",),
            vmem_limit_bytes=vmem_limit),
    )(x, pe, wqkv, bqkv, wo, bo)
    return out


def mha_reference(x, params, num_heads):
    """Pure-JAX f32 reference mirroring the PyTorch forward (for verification)."""
    B, D, L = x.shape
    Dh = D // num_heads
    pe = make_positional_encoding(L, D, x.dtype)                    # (D, L)
    xt = jnp.transpose(x + pe[None], (0, 2, 1))                     # (B, L, D)
    q = xt @ params["wq"].T + params["bq"]
    k = xt @ params["wk"].T + params["bk"]
    v = xt @ params["wv"].T + params["bv"]
    split = lambda t: jnp.transpose(t.reshape(B, L, num_heads, Dh), (0, 2, 1, 3))
    q, k, v = split(q), split(k), split(v)
    s = jnp.einsum("bhqd,bhkd->bhqk", q, k) / jnp.sqrt(jnp.float32(Dh))
    p = jax.nn.softmax(s, axis=-1)
    o = jnp.einsum("bhqk,bhkd->bhqd", p, v)
    o = jnp.transpose(o, (0, 2, 1, 3)).reshape(B, L, D)
    o = o @ params["wo"].T + params["bo"]
    return jnp.transpose(o, (0, 2, 1))


def init_params(key, d_model):
    # Deterministic init mimicking nn.Linear default (uniform +/- 1/sqrt(fan_in)).
    bound = 1.0 / math.sqrt(d_model)
    keys = jax.random.split(key, 8)
    u = lambda k, shape: jax.random.uniform(k, shape, jnp.float32, -bound, bound)
    return {
        "wq": u(keys[0], (d_model, d_model)), "bq": u(keys[1], (d_model,)),
        "wk": u(keys[2], (d_model, d_model)), "bk": u(keys[3], (d_model,)),
        "wv": u(keys[4], (d_model, d_model)), "bv": u(keys[5], (d_model,)),
        "wo": u(keys[6], (d_model, d_model)), "bo": u(keys[7], (d_model,)),
    }
    # TODO(synk): the unused self.mha (nn.MultiheadAttention) in __init__ never
    # participates in forward(), so it is intentionally not instantiated here.


if __name__ == "__main__":
    B, d_model, L, num_heads = 2, 32, 16, 4

    key = jax.random.PRNGKey(0)
    kx, kp = jax.random.split(key)
    x = jax.random.normal(kx, (B, d_model, L), dtype=jnp.float32)
    params = init_params(kp, d_model)

    out = mha_pallas(x, params, num_heads)
    out = jax.block_until_ready(out)

    ref = mha_reference(x, params, num_heads)
    assert out.shape == (B, d_model, L)
    # Tolerance reflects bf16 MXU operands in the kernel (all three matmuls use
    # bf16 inputs with f32 accumulation) vs the full-f32 reference; the softmax
    # reciprocal is Newton-refined and contributes negligibly.
    assert jnp.allclose(out, ref, atol=3e-2, rtol=3e-2), "mismatch vs reference"

    print("KERNEL_OK")
</pallas_src>

<mosaic_0001>
module attributes {stable_mosaic.version = 11 : i64} {
  func.func @_mha_kernel(%arg0: i32, %arg1: memref<1x32x16xf32, #tpu.memory_space<vmem>>, %arg2: memref<32x16xf32, #tpu.memory_space<vmem>>, %arg3: memref<32x96xbf16, #tpu.memory_space<vmem>>, %arg4: memref<1x96xf32, #tpu.memory_space<vmem>>, %arg5: memref<32x32xbf16, #tpu.memory_space<vmem>>, %arg6: memref<1x32xf32, #tpu.memory_space<vmem>>, %arg7: memref<1x32x16xf32, #tpu.memory_space<vmem>>, %arg8: memref<16x32xbf16, #tpu.memory_space<vmem>>, %arg9: memref<16x96xbf16, #tpu.memory_space<vmem>>, %arg10: memref<16x32xbf16, #tpu.memory_space<vmem>>) attributes {dimension_semantics = [#tpu.dimension_semantics<parallel>], iteration_bounds = array<i64: 2>, scalar_prefetch = 0 : i64, scratch_operands = 3 : i64, tpu.core_type = #tpu.core_type<tc>, window_params = [{transform_indices = @transform_0, window_bounds = array<i64: 1, 32, 16>}, {pipeline_mode = #tpu.pipeline_mode<synchronous>, transform_indices = @transform_1, window_bounds = array<i64: 32, 16>}, {pipeline_mode = #tpu.pipeline_mode<synchronous>, transform_indices = @transform_2, window_bounds = array<i64: 32, 96>}, {pipeline_mode = #tpu.pipeline_mode<synchronous>, transform_indices = @transform_3, window_bounds = array<i64: 1, 96>}, {pipeline_mode = #tpu.pipeline_mode<synchronous>, transform_indices = @transform_4, window_bounds = array<i64: 32, 32>}, {pipeline_mode = #tpu.pipeline_mode<synchronous>, transform_indices = @transform_5, window_bounds = array<i64: 1, 32>}, {transform_indices = @transform_6, window_bounds = array<i64: 1, 32, 16>}]} {
    %c0 = arith.constant 0 : index
    %c0_0 = arith.constant 0 : index
    %c0_1 = arith.constant 0 : index
    %0 = vector.load %arg1[%c0, %c0_0, %c0_1] : memref<1x32x16xf32, #tpu.memory_space<vmem>>, vector<1x32x16xf32>
    %c0_2 = arith.constant 0 : index
    %c0_3 = arith.constant 0 : index
    %1 = vector.load %arg2[%c0_2, %c0_3] : memref<32x16xf32, #tpu.memory_space<vmem>>, vector<32x16xf32>
    %2 = vector.shape_cast %1 : vector<32x16xf32> to vector<1x32x16xf32>
    %3 = arith.addf %0, %2 : vector<1x32x16xf32>
    %4 = arith.truncf %3 : vector<1x32x16xf32> to vector<1x32x16xbf16>
    %5 = tpu.transpose %4, [0, 2, 1] : vector<1x32x16xbf16> -> vector<1x16x32xbf16>
    %6 = vector.shape_cast %5 : vector<1x16x32xbf16> to vector<16x32xbf16>
    %c0_4 = arith.constant 0 : index
    %c0_5 = arith.constant 0 : index
    %7 = vector.load %arg8[%c0_4, %c0_5] : memref<16x32xbf16, #tpu.memory_space<vmem>>, vector<16x32xbf16>
    tpu.vector_store %arg8[%c0_4, %c0_5], %6 {strides = array<i32>} : memref<16x32xbf16, #tpu.memory_space<vmem>>, vector<16x32xbf16>,
    %c0_6 = arith.constant 0 : index
    %c0_7 = arith.constant 0 : index
    %8 = vector.load %arg8[%c0_6, %c0_7] : memref<16x32xbf16, #tpu.memory_space<vmem>>, vector<16x32xbf16>
    %c0_8 = arith.constant 0 : index
    %c0_9 = arith.constant 0 : index
    %9 = vector.load %arg3[%c0_8, %c0_9] : memref<32x96xbf16, #tpu.memory_space<vmem>>, vector<32x96xbf16>
    %cst = arith.constant dense<0.000000e+00> : vector<16x96xf32>
    %10 = tpu.matmul %8, %9, %cst {dimension_numbers = #tpu.dot_dimension_numbers<[1], [0], [0], [1], [0, 0, 1, 1], [], []>} : vector<16x32xbf16>, vector<32x96xbf16>, vector<16x96xf32> -> vector<16x96xf32>
    %c0_10 = arith.constant 0 : index
    %c0_11 = arith.constant 0 : index
    %11 = vector.load %arg4[%c0_10, %c0_11] : memref<1x96xf32, #tpu.memory_space<vmem>>, vector<1x96xf32>
    %12 = vector.broadcast %11 : vector<1x96xf32> to vector<16x96xf32>
    %13 = arith.addf %10, %12 : vector<16x96xf32>
    %14 = arith.truncf %13 : vector<16x96xf32> to vector<16x96xbf16>
    %c0_12 = arith.constant 0 : index
    %c0_13 = arith.constant 0 : index
    %15 = vector.load %arg9[%c0_12, %c0_13] : memref<16x96xbf16, #tpu.memory_space<vmem>>, vector<16x96xbf16>
    tpu.vector_store %arg9[%c0_12, %c0_13], %14 {strides = array<i32>} : memref<16x96xbf16, #tpu.memory_space<vmem>>, vector<16x96xbf16>,
    %c0_14 = arith.constant 0 : index
    %c0_15 = arith.constant 0 : index
    %16 = vector.load %arg9[%c0_14, %c0_15] : memref<16x96xbf16, #tpu.memory_space<vmem>>, vector<16x8xbf16>
    %17 = vector.shape_cast %16 : vector<16x8xbf16> to vector<1x16x8xbf16>
    %c0_16 = arith.constant 0 : index
    %c32 = arith.constant 32 : index
    %18 = vector.load %arg9[%c0_16, %c32] : memref<16x96xbf16, #tpu.memory_space<vmem>>, vector<16x8xbf16>
    %19 = vector.shape_cast %18 : vector<16x8xbf16> to vector<1x16x8xbf16>
    %c0_17 = arith.constant 0 : index
    %c64 = arith.constant 64 : index
    %20 = vector.load %arg9[%c0_17, %c64] : memref<16x96xbf16, #tpu.memory_space<vmem>>, vector<16x8xbf16>
    %21 = vector.shape_cast %20 : vector<16x8xbf16> to vector<1x16x8xbf16>
    "tpu.trace_start"() <{level = 10 : i32, message = "bqd,bkd->bqk"}> : () -> ()
    %cst_18 = arith.constant dense<0.000000e+00> : vector<1x16x16xf32>
    %22 = tpu.matmul %17, %19, %cst_18 {dimension_numbers = #tpu.dot_dimension_numbers<[2], [2], [1], [1], [0, 0, 0, 1, 1, 1], [0], [0]>} : vector<1x16x8xbf16>, vector<1x16x8xbf16>, vector<1x16x16xf32> -> vector<1x16x16xf32>
    "tpu.trace_stop"() : () -> ()
    %cst_19 = arith.constant dense<0xFF800000> : vector<1x16xf32>
    %23 = vector.multi_reduction <maximumf>, %22, %cst_19 [2] : vector<1x16x16xf32> to vector<1x16xf32>
    %24 = vector.shape_cast %23 : vector<1x16xf32> to vector<1x16x1xf32>
    %25 = vector.broadcast %24 : vector<1x16x1xf32> to vector<1x16x16xf32>
    %26 = arith.subf %22, %25 : vector<1x16x16xf32>
    %27 = math.exp %26 : vector<1x16x16xf32>
    %cst_20 = arith.constant dense<0.000000e+00> : vector<1x16xf32>
    %28 = vector.multi_reduction <add>, %27, %cst_20 [2] : vector<1x16x16xf32> to vector<1x16xf32>
    %29 = vector.shape_cast %28 : vector<1x16xf32> to vector<1x16x1xf32>
    %30 = tpu.reciprocal %29 {approx = true} : vector<1x16x1xf32> -> vector<1x16x1xf32>
    %31 = arith.mulf %29, %30 : vector<1x16x1xf32>
    %cst_21 = arith.constant 2.000000e+00 : f32
    %32 = vector.broadcast %cst_21 : f32 to vector<1x16x1xf32>
    %33 = arith.subf %32, %31 : vector<1x16x1xf32>
    %34 = arith.mulf %30, %33 : vector<1x16x1xf32>
    %35 = vector.broadcast %34 : vector<1x16x1xf32> to vector<1x16x16xf32>
    %36 = arith.mulf %27, %35 : vector<1x16x16xf32>
    %37 = arith.truncf %36 : vector<1x16x16xf32> to vector<1x16x16xbf16>
    "tpu.trace_start"() <{level = 10 : i32, message = "bqk,bkd->bqd"}> : () -> ()
    %cst_22 = arith.constant dense<0.000000e+00> : vector<1x16x8xf32>
    %38 = tpu.matmul %37, %21, %cst_22 {dimension_numbers = #tpu.dot_dimension_numbers<[2], [1], [1], [2], [0, 0, 0, 1, 1, 2], [0], [0]>} : vector<1x16x16xbf16>, vector<1x16x8xbf16>, vector<1x16x8xf32> -> vector<1x16x8xf32>
    "tpu.trace_stop"() : () -> ()
    %39 = vector.shape_cast %38 : vector<1x16x8xf32> to vector<16x8xf32>
    %40 = arith.truncf %39 : vector<16x8xf32> to vector<16x8xbf16>
    %c0_23 = arith.constant 0 : index
    %c0_24 = arith.constant 0 : index
    %41 = vector.load %arg10[%c0_23, %c0_24] : memref<16x32xbf16, #tpu.memory_space<vmem>>, vector<16x8xbf16>
    tpu.vector_store %arg10[%c0_23, %c0_24], %40 {strides = array<i32>} : memref<16x32xbf16, #tpu.memory_space<vmem>>, vector<16x8xbf16>,
    %c0_25 = arith.constant 0 : index
    %c8 = arith.constant 8 : index
    %42 = vector.load %arg9[%c0_25, %c8] : memref<16x96xbf16, #tpu.memory_space<vmem>>, vector<16x8xbf16>
    %43 = vector.shape_cast %42 : vector<16x8xbf16> to vector<1x16x8xbf16>
    %c0_26 = arith.constant 0 : index
    %c40 = arith.constant 40 : index
    %44 = vector.load %arg9[%c0_26, %c40] : memref<16x96xbf16, #tpu.memory_space<vmem>>, vector<16x8xbf16>
    %45 = vector.shape_cast %44 : vector<16x8xbf16> to vector<1x16x8xbf16>
    %c0_27 = arith.constant 0 : index
    %c72 = arith.constant 72 : index
    %46 = vector.load %arg9[%c0_27, %c72] : memref<16x96xbf16, #tpu.memory_space<vmem>>, vector<16x8xbf16>
    %47 = vector.shape_cast %46 : vector<16x8xbf16> to vector<1x16x8xbf16>
    "tpu.trace_start"() <{level = 10 : i32, message = "bqd,bkd->bqk"}> : () -> ()
    %cst_28 = arith.constant dense<0.000000e+00> : vector<1x16x16xf32>
    %48 = tpu.matmul %43, %45, %cst_28 {dimension_numbers = #tpu.dot_dimension_numbers<[2], [2], [1], [1], [0, 0, 0, 1, 1, 1], [0], [0]>} : vector<1x16x8xbf16>, vector<1x16x8xbf16>, vector<1x16x16xf32> -> vector<1x16x16xf32>
    "tpu.trace_stop"() : () -> ()
    %cst_29 = arith.constant dense<0xFF800000> : vector<1x16xf32>
    %49 = vector.multi_reduction <maximumf>, %48, %cst_29 [2] : vector<1x16x16xf32> to vector<1x16xf32>
    %50 = vector.shape_cast %49 : vector<1x16xf32> to vector<1x16x1xf32>
    %51 = vector.broadcast %50 : vector<1x16x1xf32> to vector<1x16x16xf32>
    %52 = arith.subf %48, %51 : vector<1x16x16xf32>
    %53 = math.exp %52 : vector<1x16x16xf32>
    %cst_30 = arith.constant dense<0.000000e+00> : vector<1x16xf32>
    %54 = vector.multi_reduction <add>, %53, %cst_30 [2] : vector<1x16x16xf32> to vector<1x16xf32>
    %55 = vector.shape_cast %54 : vector<1x16xf32> to vector<1x16x1xf32>
    %56 = tpu.reciprocal %55 {approx = true} : vector<1x16x1xf32> -> vector<1x16x1xf32>
    %57 = arith.mulf %55, %56 : vector<1x16x1xf32>
    %cst_31 = arith.constant 2.000000e+00 : f32
    %58 = vector.broadcast %cst_31 : f32 to vector<1x16x1xf32>
    %59 = arith.subf %58, %57 : vector<1x16x1xf32>
    %60 = arith.mulf %56, %59 : vector<1x16x1xf32>
    %61 = vector.broadcast %60 : vector<1x16x1xf32> to vector<1x16x16xf32>
    %62 = arith.mulf %53, %61 : vector<1x16x16xf32>
    %63 = arith.truncf %62 : vector<1x16x16xf32> to vector<1x16x16xbf16>
    "tpu.trace_start"() <{level = 10 : i32, message = "bqk,bkd->bqd"}> : () -> ()
    %cst_32 = arith.constant dense<0.000000e+00> : vector<1x16x8xf32>
    %64 = tpu.matmul %63, %47, %cst_32 {dimension_numbers = #tpu.dot_dimension_numbers<[2], [1], [1], [2], [0, 0, 0, 1, 1, 2], [0], [0]>} : vector<1x16x16xbf16>, vector<1x16x8xbf16>, vector<1x16x8xf32> -> vector<1x16x8xf32>
    "tpu.trace_stop"() : () -> ()
    %65 = vector.shape_cast %64 : vector<1x16x8xf32> to vector<16x8xf32>
    %66 = arith.truncf %65 : vector<16x8xf32> to vector<16x8xbf16>
    %c0_33 = arith.constant 0 : index
    %c8_34 = arith.constant 8 : index
    %67 = vector.load %arg10[%c0_33, %c8_34] : memref<16x32xbf16, #tpu.memory_space<vmem>>, vector<16x8xbf16>
    tpu.vector_store %arg10[%c0_33, %c8_34], %66 {strides = array<i32>} : memref<16x32xbf16, #tpu.memory_space<vmem>>, vector<16x8xbf16>,
    %c0_35 = arith.constant 0 : index
    %c16 = arith.constant 16 : index
    %68 = vector.load %arg9[%c0_35, %c16] : memref<16x96xbf16, #tpu.memory_space<vmem>>, vector<16x8xbf16>
    %69 = vector.shape_cast %68 : vector<16x8xbf16> to vector<1x16x8xbf16>
    %c0_36 = arith.constant 0 : index
    %c48 = arith.constant 48 : index
    %70 = vector.load %arg9[%c0_36, %c48] : memref<16x96xbf16, #tpu.memory_space<vmem>>, vector<16x8xbf16>
    %71 = vector.shape_cast %70 : vector<16x8xbf16> to vector<1x16x8xbf16>
    %c0_37 = arith.constant 0 : index
    %c80 = arith.constant 80 : index
    %72 = vector.load %arg9[%c0_37, %c80] : memref<16x96xbf16, #tpu.memory_space<vmem>>, vector<16x8xbf16>
    %73 = vector.shape_cast %72 : vector<16x8xbf16> to vector<1x16x8xbf16>
    "tpu.trace_start"() <{level = 10 : i32, message = "bqd,bkd->bqk"}> : () -> ()
    %cst_38 = arith.constant dense<0.000000e+00> : vector<1x16x16xf32>
    %74 = tpu.matmul %69, %71, %cst_38 {dimension_numbers = #tpu.dot_dimension_numbers<[2], [2], [1], [1], [0, 0, 0, 1, 1, 1], [0], [0]>} : vector<1x16x8xbf16>, vector<1x16x8xbf16>, vector<1x16x16xf32> -> vector<1x16x16xf32>
    "tpu.trace_stop"() : () -> ()
    %cst_39 = arith.constant dense<0xFF800000> : vector<1x16xf32>
    %75 = vector.multi_reduction <maximumf>, %74, %cst_39 [2] : vector<1x16x16xf32> to vector<1x16xf32>
    %76 = vector.shape_cast %75 : vector<1x16xf32> to vector<1x16x1xf32>
    %77 = vector.broadcast %76 : vector<1x16x1xf32> to vector<1x16x16xf32>
    %78 = arith.subf %74, %77 : vector<1x16x16xf32>
    %79 = math.exp %78 : vector<1x16x16xf32>
    %cst_40 = arith.constant dense<0.000000e+00> : vector<1x16xf32>
    %80 = vector.multi_reduction <add>, %79, %cst_40 [2] : vector<1x16x16xf32> to vector<1x16xf32>
    %81 = vector.shape_cast %80 : vector<1x16xf32> to vector<1x16x1xf32>
    %82 = tpu.reciprocal %81 {approx = true} : vector<1x16x1xf32> -> vector<1x16x1xf32>
    %83 = arith.mulf %81, %82 : vector<1x16x1xf32>
    %cst_41 = arith.constant 2.000000e+00 : f32
    %84 = vector.broadcast %cst_41 : f32 to vector<1x16x1xf32>
    %85 = arith.subf %84, %83 : vector<1x16x1xf32>
    %86 = arith.mulf %82, %85 : vector<1x16x1xf32>
    %87 = vector.broadcast %86 : vector<1x16x1xf32> to vector<1x16x16xf32>
    %88 = arith.mulf %79, %87 : vector<1x16x16xf32>
    %89 = arith.truncf %88 : vector<1x16x16xf32> to vector<1x16x16xbf16>
    "tpu.trace_start"() <{level = 10 : i32, message = "bqk,bkd->bqd"}> : () -> ()
    %cst_42 = arith.constant dense<0.000000e+00> : vector<1x16x8xf32>
    %90 = tpu.matmul %89, %73, %cst_42 {dimension_numbers = #tpu.dot_dimension_numbers<[2], [1], [1], [2], [0, 0, 0, 1, 1, 2], [0], [0]>} : vector<1x16x16xbf16>, vector<1x16x8xbf16>, vector<1x16x8xf32> -> vector<1x16x8xf32>
    "tpu.trace_stop"() : () -> ()
    %91 = vector.shape_cast %90 : vector<1x16x8xf32> to vector<16x8xf32>
    %92 = arith.truncf %91 : vector<16x8xf32> to vector<16x8xbf16>
    %c0_43 = arith.constant 0 : index
    %c16_44 = arith.constant 16 : index
    %93 = vector.load %arg10[%c0_43, %c16_44] : memref<16x32xbf16, #tpu.memory_space<vmem>>, vector<16x8xbf16>
    tpu.vector_store %arg10[%c0_43, %c16_44], %92 {strides = array<i32>} : memref<16x32xbf16, #tpu.memory_space<vmem>>, vector<16x8xbf16>,
    %c0_45 = arith.constant 0 : index
    %c24 = arith.constant 24 : index
    %94 = vector.load %arg9[%c0_45, %c24] : memref<16x96xbf16, #tpu.memory_space<vmem>>, vector<16x8xbf16>
    %95 = vector.shape_cast %94 : vector<16x8xbf16> to vector<1x16x8xbf16>
    %c0_46 = arith.constant 0 : index
    %c56 = arith.constant 56 : index
    %96 = vector.load %arg9[%c0_46, %c56] : memref<16x96xbf16, #tpu.memory_space<vmem>>, vector<16x8xbf16>
    %97 = vector.shape_cast %96 : vector<16x8xbf16> to vector<1x16x8xbf16>
    %c0_47 = arith.constant 0 : index
    %c88 = arith.constant 88 : index
    %98 = vector.load %arg9[%c0_47, %c88] : memref<16x96xbf16, #tpu.memory_space<vmem>>, vector<16x8xbf16>
    %99 = vector.shape_cast %98 : vector<16x8xbf16> to vector<1x16x8xbf16>
    "tpu.trace_start"() <{level = 10 : i32, message = "bqd,bkd->bqk"}> : () -> ()
    %cst_48 = arith.constant dense<0.000000e+00> : vector<1x16x16xf32>
    %100 = tpu.matmul %95, %97, %cst_48 {dimension_numbers = #tpu.dot_dimension_numbers<[2], [2], [1], [1], [0, 0, 0, 1, 1, 1], [0], [0]>} : vector<1x16x8xbf16>, vector<1x16x8xbf16>, vector<1x16x16xf32> -> vector<1x16x16xf32>
    "tpu.trace_stop"() : () -> ()
    %cst_49 = arith.constant dense<0xFF800000> : vector<1x16xf32>
    %101 = vector.multi_reduction <maximumf>, %100, %cst_49 [2] : vector<1x16x16xf32> to vector<1x16xf32>
    %102 = vector.shape_cast %101 : vector<1x16xf32> to vector<1x16x1xf32>
    %103 = vector.broadcast %102 : vector<1x16x1xf32> to vector<1x16x16xf32>
    %104 = arith.subf %100, %103 : vector<1x16x16xf32>
    %105 = math.exp %104 : vector<1x16x16xf32>
    %cst_50 = arith.constant dense<0.000000e+00> : vector<1x16xf32>
    %106 = vector.multi_reduction <add>, %105, %cst_50 [2] : vector<1x16x16xf32> to vector<1x16xf32>
    %107 = vector.shape_cast %106 : vector<1x16xf32> to vector<1x16x1xf32>
    %108 = tpu.reciprocal %107 {approx = true} : vector<1x16x1xf32> -> vector<1x16x1xf32>
    %109 = arith.mulf %107, %108 : vector<1x16x1xf32>
    %cst_51 = arith.constant 2.000000e+00 : f32
    %110 = vector.broadcast %cst_51 : f32 to vector<1x16x1xf32>
    %111 = arith.subf %110, %109 : vector<1x16x1xf32>
    %112 = arith.mulf %108, %111 : vector<1x16x1xf32>
    %113 = vector.broadcast %112 : vector<1x16x1xf32> to vector<1x16x16xf32>
    %114 = arith.mulf %105, %113 : vector<1x16x16xf32>
    %115 = arith.truncf %114 : vector<1x16x16xf32> to vector<1x16x16xbf16>
    "tpu.trace_start"() <{level = 10 : i32, message = "bqk,bkd->bqd"}> : () -> ()
    %cst_52 = arith.constant dense<0.000000e+00> : vector<1x16x8xf32>
    %116 = tpu.matmul %115, %99, %cst_52 {dimension_numbers = #tpu.dot_dimension_numbers<[2], [1], [1], [2], [0, 0, 0, 1, 1, 2], [0], [0]>} : vector<1x16x16xbf16>, vector<1x16x8xbf16>, vector<1x16x8xf32> -> vector<1x16x8xf32>
    "tpu.trace_stop"() : () -> ()
    %117 = vector.shape_cast %116 : vector<1x16x8xf32> to vector<16x8xf32>
    %118 = arith.truncf %117 : vector<16x8xf32> to vector<16x8xbf16>
    %c0_53 = arith.constant 0 : index
    %c24_54 = arith.constant 24 : index
    %119 = vector.load %arg10[%c0_53, %c24_54] : memref<16x32xbf16, #tpu.memory_space<vmem>>, vector<16x8xbf16>
    tpu.vector_store %arg10[%c0_53, %c24_54], %118 {strides = array<i32>} : memref<16x32xbf16, #tpu.memory_space<vmem>>, vector<16x8xbf16>,
    %c0_55 = arith.constant 0 : index
    %c0_56 = arith.constant 0 : index
    %120 = vector.load %arg10[%c0_55, %c0_56] : memref<16x32xbf16, #tpu.memory_space<vmem>>, vector<16x32xbf16>
    %c0_57 = arith.constant 0 : index
    %c0_58 = arith.constant 0 : index
    %121 = vector.load %arg5[%c0_57, %c0_58] : memref<32x32xbf16, #tpu.memory_space<vmem>>, vector<32x32xbf16>
    %cst_59 = arith.constant dense<0.000000e+00> : vector<16x32xf32>
    %122 = tpu.matmul %120, %121, %cst_59 {dimension_numbers = #tpu.dot_dimension_numbers<[1], [0], [0], [1], [0, 0, 1, 1], [], []>} : vector<16x32xbf16>, vector<32x32xbf16>, vector<16x32xf32> -> vector<16x32xf32>
    %c0_60 = arith.constant 0 : index
    %c0_61 = arith.constant 0 : index
    %123 = vector.load %arg6[%c0_60, %c0_61] : memref<1x32xf32, #tpu.memory_space<vmem>>, vector<1x32xf32>
    %124 = vector.broadcast %123 : vector<1x32xf32> to vector<16x32xf32>
    %125 = arith.addf %122, %124 : vector<16x32xf32>
    %126 = vector.shape_cast %125 : vector<16x32xf32> to vector<1x16x32xf32>
    %127 = tpu.transpose %126, [0, 2, 1] : vector<1x16x32xf32> -> vector<1x32x16xf32>
    %c0_62 = arith.constant 0 : index
    %c0_63 = arith.constant 0 : index
    %c0_64 = arith.constant 0 : index
    %128 = vector.load %arg7[%c0_62, %c0_63, %c0_64] : memref<1x32x16xf32, #tpu.memory_space<vmem>>, vector<1x32x16xf32>
    tpu.vector_store %arg7[%c0_62, %c0_63, %c0_64], %127 {strides = array<i32>} : memref<1x32x16xf32, #tpu.memory_space<vmem>>, vector<1x32x16xf32>,
    return
  }
  func.func @transform_0(%arg0: i32) -> (i32, i32, i32) {
    %c0_i32 = arith.constant 0 : i32
    %c0_i32_0 = arith.constant 0 : i32
    %c0_i32_1 = arith.constant 0 : i32
    return %arg0, %c0_i32, %c0_i32_0 : i32, i32, i32
  }
  func.func @transform_1(%arg0: i32) -> (i32, i32) {
    %c0_i32 = arith.constant 0 : i32
    %c0_i32_0 = arith.constant 0 : i32
    %c0_i32_1 = arith.constant 0 : i32
    return %c0_i32, %c0_i32_0 : i32, i32
  }
  func.func @transform_2(%arg0: i32) -> (i32, i32) {
    %c0_i32 = arith.constant 0 : i32
    %c0_i32_0 = arith.constant 0 : i32
    %c0_i32_1 = arith.constant 0 : i32
    return %c0_i32, %c0_i32_0 : i32, i32
  }
  func.func @transform_3(%arg0: i32) -> (i32, i32) {
    %c0_i32 = arith.constant 0 : i32
    %c0_i32_0 = arith.constant 0 : i32
    %c0_i32_1 = arith.constant 0 : i32
    return %c0_i32, %c0_i32_0 : i32, i32
  }
  func.func @transform_4(%arg0: i32) -> (i32, i32) {
    %c0_i32 = arith.constant 0 : i32
    %c0_i32_0 = arith.constant 0 : i32
    %c0_i32_1 = arith.constant 0 : i32
    return %c0_i32, %c0_i32_0 : i32, i32
  }
  func.func @transform_5(%arg0: i32) -> (i32, i32) {
    %c0_i32 = arith.constant 0 : i32
    %c0_i32_0 = arith.constant 0 : i32
    %c0_i32_1 = arith.constant 0 : i32
    return %c0_i32, %c0_i32_0 : i32, i32
  }
  func.func @transform_6(%arg0: i32) -> (i32, i32, i32) {
    %c0_i32 = arith.constant 0 : i32
    %c0_i32_0 = arith.constant 0 : i32
    %c0_i32_1 = arith.constant 0 : i32
    return %arg0, %c0_i32, %c0_i32_0 : i32, i32, i32
  }
}

</mosaic_0001>

<llo_original>
// kernel: tpu_custom_call.1
$region0: #{tpu_custom_call.1}
  #allocation0 [shape = 'u32[]', space=smem, size = 0x4, offset = 0x4, fixed_abs, tag = 'smem constant byte address 0x4 - core index']
  #allocation1 [shape = 'u32[72,128]{1,0:T(1,128)}', space=vmem, size = 0x9000, scoped, tag = 'internal scratch']
  #allocation2 [shape = 'bf16[16,32]{1,0:T(8,128)(2,1)}', space=vmem, size = 0x1000, scoped, tag = 'scratch operand']
  #allocation3 [shape = 'bf16[16,96]{1,0:T(8,128)(2,1)}', space=vmem, size = 0x1000, scoped, tag = 'scratch operand']
  #allocation4 [shape = 'bf16[16,32]{1,0:T(8,128)(2,1)}', space=vmem, size = 0x1000, scoped, tag = 'scratch operand']
  %s0 = inlined_call_operand.vmem [shape: f32[2,32,16], index: 0, kind: input, shape index: {}]
  %s1 = inlined_call_operand.vmem [shape: f32[32,16], index: 1, kind: input, shape index: {}]
  %s2 = inlined_call_operand.vmem [shape: bf16[32,96], index: 2, kind: input, shape index: {}]
  %s3 = inlined_call_operand.vmem [shape: f32[1,96], index: 3, kind: input, shape index: {}]
  %s4 = inlined_call_operand.vmem [shape: bf16[32,32], index: 4, kind: input, shape index: {}]
  %s5 = inlined_call_operand.vmem [shape: f32[1,32], index: 5, kind: input, shape index: {}]
  %s6 = inlined_call_operand.vmem [shape: f32[2,32,16], index: 6, kind: output, shape index: {}]
  %s7 = sld [smem:[#allocation0]]
  $region57: #{tpu_custom_call.1} parent=0
    _
  %s9 = ssub.s32 1, %s7
  %s10 = scalar_select 0, %s9, %s7
  loop: start=0, step=1, limit=4
  $region2: #{tpu_custom_call.1} parent=0 // loop_pre_header
    _
  $region3: #{tpu_custom_call.1} parent=0 // loop_header
    %s12 = sphi 0, %s16
    %p13 = scmp.ge.s32.totalorder %s12, 4
    %s22 = sphi 0, %s24
    %s25 = sphi 0, %s22
    %s26 = sphi 0, %s25
    %s42 = sphi 0, %s26
    %s46 = sphi 0, %s46
    %s48 = sphi 0, %s46
    %s49 = sphi 0, %s48
    %s63 = sphi 0, %s49
    %s67 = sphi 0, %s67
    %s69 = sphi 0, %s67
    %s70 = sphi 0, %s69
    %s84 = sphi 0, %s70
    %s88 = sphi 0, %s88
    %s90 = sphi 0, %s88
    %s91 = sphi 0, %s90
    %s105 = sphi 0, %s91
    %s109 = sphi 0, %s109
    %s111 = sphi 0, %s109
    %s112 = sphi 0, %s111
    %s126 = sphi 0, %s112
    %s130 = sphi 0, %s130
    %s132 = sphi 0, %s130
    %s133 = sphi 0, %s132
    %s147 = sphi 0, %s133
    %s153 = sphi 0, %s155
    %s156 = sphi 0, %s153
    %s157 = sphi 0, %s156
    %s173 = sphi 0, %s157
  $region4: #{tpu_custom_call.1} parent=0 // loop_header_branch
    %15 = sbr.rel (%p13) target = $region8
  $region5: #{tpu_custom_call.1} parent=0 // loop_body
    %s17 = ssub.s32 %s12, 1
    %s18 = ssub.s32 %s12, 2
    %s19 = sadd.s32 %s12, 1
    %s20 = ssub.s32 %s12, %s19
    %p21 = scmp.eq.s32.totalorder %s20, 0
    %s23 = sadd.s32 %s22, 1
    %s24 = scalar_select %p21, %s22, %s23
    %p27 = pneg %p21
    %p28 = scmp.eq.s32.totalorder %s12, 1
    %p29 = por %p27, %p28
    %p30 = scmp.ne.s32.totalorder %s22, %s25
    %p31 = scmp.eq.s32.totalorder %s12, 0
    %p32 = por %p30, %p31
    %p33 = scmp.ne.s32.totalorder %s22, %s25
    %p34 = scmp.eq.s32.totalorder %s17, 1
    %p35 = por %p33, %p34
    %p36 = scmp.ne.s32.totalorder %s25, %s26
    %p37 = scmp.eq.s32.totalorder %s17, 0
    %p38 = por %p36, %p37
    %p39 = scmp.ne.s32.totalorder %s25, %s26
    %p40 = scmp.eq.s32.totalorder %s18, 1
    %p41 = por %p39, %p40
    %p43 = scmp.ne.s32.totalorder %s26, %s42
    %p44 = scmp.eq.s32.totalorder %s18, 0
    %p45 = por %p43, %p44
    %s47 = sadd.s32 %s46, 1
    %p50 = scmp.eq.s32.totalorder %s12, 1
    %p51 = scmp.ne.s32.totalorder %s46, %s48
    %p52 = scmp.eq.s32.totalorder %s12, 0
    %p53 = por %p51, %p52
    %p54 = scmp.ne.s32.totalorder %s46, %s48
    %p55 = scmp.eq.s32.totalorder %s17, 1
    %p56 = por %p54, %p55
    %p57 = scmp.ne.s32.totalorder %s48, %s49
    %p58 = scmp.eq.s32.totalorder %s17, 0
    %p59 = por %p57, %p58
    %p60 = scmp.ne.s32.totalorder %s48, %s49
    %p61 = scmp.eq.s32.totalorder %s18, 1
    %p62 = por %p60, %p61
    %p64 = scmp.ne.s32.totalorder %s49, %s63
    %p65 = scmp.eq.s32.totalorder %s18, 0
    %p66 = por %p64, %p65
    %s68 = sadd.s32 %s67, 1
    %p71 = scmp.eq.s32.totalorder %s12, 1
    %p72 = scmp.ne.s32.totalorder %s67, %s69
    %p73 = scmp.eq.s32.totalorder %s12, 0
    %p74 = por %p72, %p73
    %p75 = scmp.ne.s32.totalorder %s67, %s69
    %p76 = scmp.eq.s32.totalorder %s17, 1
    %p77 = por %p75, %p76
    %p78 = scmp.ne.s32.totalorder %s69, %s70
    %p79 = scmp.eq.s32.totalorder %s17, 0
    %p80 = por %p78, %p79
    %p81 = scmp.ne.s32.totalorder %s69, %s70
    %p82 = scmp.eq.s32.totalorder %s18, 1
    %p83 = por %p81, %p82
    %p85 = scmp.ne.s32.totalorder %s70, %s84
    %p86 = scmp.eq.s32.totalorder %s18, 0
    %p87 = por %p85, %p86
    %s89 = sadd.s32 %s88, 1
    %p92 = scmp.eq.s32.totalorder %s12, 1
    %p93 = scmp.ne.s32.totalorder %s88, %s90
    %p94 = scmp.eq.s32.totalorder %s12, 0
    %p95 = por %p93, %p94
    %p96 = scmp.ne.s32.totalorder %s88, %s90
    %p97 = scmp.eq.s32.totalorder %s17, 1
    %p98 = por %p96, %p97
    %p99 = scmp.ne.s32.totalorder %s90, %s91
    %p100 = scmp.eq.s32.totalorder %s17, 0
    %p101 = por %p99, %p100
    %p102 = scmp.ne.s32.totalorder %s90, %s91
    %p103 = scmp.eq.s32.totalorder %s18, 1
    %p104 = por %p102, %p103
    %p106 = scmp.ne.s32.totalorder %s91, %s105
    %p107 = scmp.eq.s32.totalorder %s18, 0
    %p108 = por %p106, %p107
    %s110 = sadd.s32 %s109, 1
    %p113 = scmp.eq.s32.totalorder %s12, 1
    %p114 = scmp.ne.s32.totalorder %s109, %s111
    %p115 = scmp.eq.s32.totalorder %s12, 0
    %p116 = por %p114, %p115
    %p117 = scmp.ne.s32.totalorder %s109, %s111
    %p118 = scmp.eq.s32.totalorder %s17, 1
    %p119 = por %p117, %p118
    %p120 = scmp.ne.s32.totalorder %s111, %s112
    %p121 = scmp.eq.s32.totalorder %s17, 0
    %p122 = por %p120, %p121
    %p123 = scmp.ne.s32.totalorder %s111, %s112
    %p124 = scmp.eq.s32.totalorder %s18, 1
    %p125 = por %p123, %p124
    %p127 = scmp.ne.s32.totalorder %s112, %s126
    %p128 = scmp.eq.s32.totalorder %s18, 0
    %p129 = por %p127, %p128
    %s131 = sadd.s32 %s130, 1
    %p134 = scmp.eq.s32.totalorder %s12, 1
    %p135 = scmp.ne.s32.totalorder %s130, %s132
    %p136 = scmp.eq.s32.totalorder %s12, 0
    %p137 = por %p135, %p136
    %p138 = scmp.ne.s32.totalorder %s130, %s132
    %p139 = scmp.eq.s32.totalorder %s17, 1
    %p140 = por %p138, %p139
    %p141 = scmp.ne.s32.totalorder %s132, %s133
    %p142 = scmp.eq.s32.totalorder %s17, 0
    %p143 = por %p141, %p142
    %p144 = scmp.ne.s32.totalorder %s132, %s133
    %p145 = scmp.eq.s32.totalorder %s18, 1
    %p146 = por %p144, %p145
    %p148 = scmp.ne.s32.totalorder %s133, %s147
    %p149 = scmp.eq.s32.totalorder %s18, 0
    %p150 = por %p148, %p149
    %s151 = ssub.s32 %s12, %s19
    %p152 = scmp.eq.s32.totalorder %s151, 0
    %s154 = sadd.s32 %s153, 1
    %s155 = scalar_select %p152, %s153, %s154
    %p158 = pneg %p152
    %p159 = scmp.eq.s32.totalorder %s12, 1
    %p160 = por %p158, %p159
    %p161 = scmp.ne.s32.totalorder %s153, %s156
    %p162 = scmp.eq.s32.totalorder %s12, 0
    %p163 = por %p161, %p162
    %p164 = scmp.ne.s32.totalorder %s153, %s156
    %p165 = scmp.eq.s32.totalorder %s17, 1
    %p166 = por %p164, %p165
    %p167 = scmp.ne.s32.totalorder %s156, %s157
    %p168 = scmp.eq.s32.totalorder %s17, 0
    %p169 = por %p167, %p168
    %p170 = scmp.ne.s32.totalorder %s156, %s157
    %p171 = scmp.eq.s32.totalorder %s18, 1
    %p172 = por %p170, %p171
    %p174 = scmp.ne.s32.totalorder %s157, %s173
    %p175 = scmp.eq.s32.totalorder %s18, 0
    %p176 = por %p174, %p175
    %p177 = scmp.le.s32.totalorder 1, %s12
    %p178 = scmp.lt.s32.totalorder %s12, 3
    %p179 = pnand %p177, %p178
    %p180 = pneg %p179
    // Predicated region
    $region9: #{tpu_custom_call.1} parent=5 // pred_check
      _
    $region10: #{tpu_custom_call.1} parent=5 // pred_check_branch
      %182 = sbr.rel (%p179) target = $region12
    $region11: #{tpu_custom_call.1} parent=5 // pred_region
      %s183 = ssub.s32 %s12, 1
      // Predicated region
      $region13: #{tpu_custom_call.1} parent=11 // pred_check
        %p184 = pneg %p59
      $region14: #{tpu_custom_call.1} parent=11 // pred_check_branch
        %186 = sbr.rel (%p184) target = $region16
      $region15: #{tpu_custom_call.1} parent=11 // pred_region
        _
      $region16: #{tpu_custom_call.1} parent=11 // pred_fallthru
        _
      // Predicated region
      $region17: #{tpu_custom_call.1} parent=11 // pred_check
        %p187 = pneg %p80
      $region18: #{tpu_custom_call.1} parent=11 // pred_check_branch
        %189 = sbr.rel (%p187) target = $region20
      $region19: #{tpu_custom_call.1} parent=11 // pred_region
        _
      $region20: #{tpu_custom_call.1} parent=11 // pred_fallthru
        _
      // Predicated region
      $region21: #{tpu_custom_call.1} parent=11 // pred_check
        %p190 = pneg %p101
      $region22: #{tpu_custom_call.1} parent=11 // pred_check_branch
        %192 = sbr.rel (%p190) target = $region24
      $region23: #{tpu_custom_call.1} parent=11 // pred_region
        _
      $region24: #{tpu_custom_call.1} parent=11 // pred_fallthru
        _
      // Predicated region
      $region25: #{tpu_custom_call.1} parent=11 // pred_check
        %p193 = pneg %p122
      $region26: #{tpu_custom_call.1} parent=11 // pred_check_branch
        %195 = sbr.rel (%p193) target = $region28
      $region27: #{tpu_custom_call.1} parent=11 // pred_region
        _
      $region28: #{tpu_custom_call.1} parent=11 // pred_fallthru
        _
      // Predicated region
      $region29: #{tpu_custom_call.1} parent=11 // pred_check
        %p196 = pneg %p143
      $region30: #{tpu_custom_call.1} parent=11 // pred_check_branch
        %198 = sbr.rel (%p196) target = $region32
      $region31: #{tpu_custom_call.1} parent=11 // pred_region
        _
      $region32: #{tpu_custom_call.1} parent=11 // pred_fallthru
        _
    $region12: #{tpu_custom_call.1} parent=5 // pred_fallthru
      _
    %p199 = scmp.lt.s32.totalorder %s12, 2
    // Predicated region
    $region33: #{tpu_custom_call.1} parent=5 // pred_check
      %p200 = pneg %p199
    $region34: #{tpu_custom_call.1} parent=5 // pred_check_branch
      %202 = sbr.rel (%p200) target = $region36
    $region35: #{tpu_custom_call.1} parent=5 // pred_region
      // Predicated region
      $region37: #{tpu_custom_call.1} parent=35 // pred_check
        %p203 = pneg %p32
      $region38: #{tpu_custom_call.1} parent=35 // pred_check_branch
        %205 = sbr.rel (%p203) target = $region40
      $region39: #{tpu_custom_call.1} parent=35 // pred_region
        %p206 = scmp.lt.s32.totalorder %s12, 1
        %s207 = scalar_select %p206, %s12, 1
        %s208 = smul.addr %s207, 4
        %s209 = smul.addr %s208, 8
        %s210 = scalar_lea.vmem %s0, %s209
      $region40: #{tpu_custom_call.1} parent=35 // pred_fallthru
        _
    $region36: #{tpu_custom_call.1} parent=5 // pred_fallthru
      _
    %p211 = scmp.le.s32.totalorder 1, %s12
    %p212 = scmp.lt.s32.totalorder %s12, 3
    %p213 = pnand %p211, %p212
    %p214 = pneg %p213
    // Predicated region
    $region41: #{tpu_custom_call.1} parent=5 // pred_check
      _
    $region42: #{tpu_custom_call.1} parent=5 // pred_check_branch
      %216 = sbr.rel (%p213) target = $region44
    $region43: #{tpu_custom_call.1} parent=5 // pred_region
      %s217 = ssub.s32 %s12, 1
      %p218 = scmp.lt.s32.totalorder %s17, 1
      %s219 = scalar_select %p218, %s17, 1
      %s220 = smul.addr %s219, 4
      %s221 = smul.addr %s220, 8
      %s222 = scalar_lea.vmem %s0, %s221
      %p223 = pneg %p38
      %p224 = pneg %p35
      %p225 = pneg %p59
      %p226 = pneg %p56
      %p227 = pneg %p80
      %p228 = pneg %p77
      %p229 = pneg %p101
      %p230 = pneg %p98
      %p231 = pneg %p122
      %p232 = pneg %p119
      %p233 = pneg %p143
      %p234 = pneg %p140
      %p235 = pneg %p169
      %p236 = pneg %p166
      %p237 = scmp.lt.s32.totalorder %s17, 1
      %s238 = scalar_select %p237, %s17, 1
      %s239 = smul.addr %s238, 4
      %s240 = smul.addr %s239, 8
      %s241 = scalar_lea.vmem %s6, %s240
      %p242 = scmp.lt.s32.totalorder %s17, 1
      %s243 = scalar_select %p242, %s17, 1
      %s244 = smul.addr %s243, 4
      %s245 = smul.addr %s244, 8
      %s246 = scalar_lea.vmem %s0, %s245
      %p247 = scmp.lt.s32.totalorder %s17, 1
      %s248 = scalar_select %p247, %s17, 1
      %s249 = smul.addr %s248, 4
      %s250 = smul.addr %s249, 8
      %s251 = scalar_lea.vmem %s6, %s250
      %v253 = vld [vmem:[%s246] sm:$0xff]
      %v254 = vld [vmem:[%s246 + $0x8] sm:$0xff]
      %v255 = vld [vmem:[%s246 + $0x10] sm:$0xff]
      %v256 = vld [vmem:[%s246 + $0x18] sm:$0xff]
      %v257 = vld [vmem:[%s1] sm:$0xff]
      %v258 = vld [vmem:[%s1 + $0x8] sm:$0xff]
      %v259 = vld [vmem:[%s1 + $0x10] sm:$0xff]
      %v260 = vld [vmem:[%s1 + $0x18] sm:$0xff]
      %v261 = vadd.f32 %v253, %v257
      %v262 = vadd.f32 %v254, %v258
      %v263 = vadd.f32 %v255, %v259
      %v264 = vadd.f32 %v256, %v260
      %v265 = vpack.c.bf16 %v262, %v261
      %v266 = vpack.c.bf16 %v264, %v263
      %267 = vxpose.xlu0.c.b16.start [1/8] %v265, 128
      %268 = vxpose.xlu0.c.b16.cont [2/8] %v266, 128
      %269 = vxpose.xlu0.c.b16.cont [3/8] 0, 128
      %270 = vxpose.xlu0.c.b16.cont [4/8] 0, 128
      %271 = vxpose.xlu0.c.b16.cont [5/8] 0, 128
      %272 = vxpose.xlu0.c.b16.cont [6/8] 0, 128
      %273 = vxpose.xlu0.c.b16.cont [7/8] 0, 128
      %274 = vxpose.xlu0.c.b16.end [8/8] 0, 128
      %v275 = vpop.trf.xlu0
      %v276 = vpop.trf.xlu0
      %v277 = vpop.trf.xlu0
      %v278 = vpop.trf.xlu0
      %v279 = vpop.trf.xlu0
      %v280 = vpop.trf.xlu0
      %v281 = vpop.trf.xlu0
      %v282 = vpop.trf.xlu0
      %v284 = vunpack.c.l.b16 %v275
      %v285 = vunpack.c.h.b16 %v275
      %v286 = vpack.c.b16 %v284, %v284
      %v287 = vpack.c.b16 %v285, %v285
      %vm290 = vcmask 257024
      %291 = vst.msk [vmem:[#allocation2] sm:$0xf] %vm290, %v286
      %292 = vst.msk [vmem:[#allocation2 + $0x4] sm:$0xf] %vm290, %v287
      %v293 = vld [vmem:[#allocation2] sm:$0xf]
      %v294 = vld [vmem:[#allocation2 + $0x4] sm:$0xf]
      %v295 = vld [vmem:[%s2] sm:$0xf]
      %v296 = vld [vmem:[%s2 + $0x4] sm:$0xf]
      %v297 = vld [vmem:[%s2 + $0x8] sm:$0xf]
      %v298 = vld [vmem:[%s2 + $0xc] sm:$0xf]
      %v299 = vld [vmem:[%s3] sm:$0x1]
      %v301 = vperm.slane %v299, 0
      %v305 = vunpack.c.l.b16 %v293
      %v306 = vunpack.c.l.b16 %v294
      %v307 = vpack.c.b16 %v306, %v305
      %v312 = vunpack.c.l.b16 %v295
      %v313 = vunpack.c.l.b16 %v296
      %v314 = vunpack.c.l.b16 %v297
      %v315 = vunpack.c.l.b16 %v298
      %v316 = vpack.c.b16 %v313, %v312
      %v317 = vpack.c.b16 %v315, %v314
      %vm320 = vcmask 261120
      %v322 = vsel %vm320, %v307, 0
      %324 = vmatpush.bf16.msra.mxu0 0
      %325 = vmatpush.bf16.msra.mxu0 0
      %326 = vmatpush.bf16.msra.mxu0 0
      %327 = vmatpush.bf16.msra.mxu0 0
      %328 = vmatpush.bf16.msra.mxu0 0
      %329 = vmatpush.bf16.msra.mxu0 0
      %330 = vmatpush.bf16.msra.mxu0 %v317
      %331 = vmatpush.bf16.msra.mxu0 %v316
      %332 = vmatmul.bf16.gmra.mxu0 %v322
      %v333 = vpop.f32.mrf.mxu0
      %v334 = vadd.f32 %v301, %v333
      %v335 = vpop.f32.mrf.mxu0
      %v336 = vadd.f32 %v301, %v335
      %337 = vdwg.mxu0
      %v338 = vpack.c.bf16 %v334, %v334
      %v339 = vpack.c.bf16 %v336, %v336
      %vm340 = vcmask 781312
      %341 = vst.msk [vmem:[#allocation3] sm:$0xf] %vm340, %v338
      %342 = vst.msk [vmem:[#allocation3 + $0x4] sm:$0xf] %vm340, %v339
      %v343 = vld [vmem:[#allocation3] sm:$0xf]
      %v344 = vld [vmem:[#allocation3 + $0x4] sm:$0xf]
      %v347 = vunpack.c.l.b16 %v343
      %v348 = vunpack.c.l.b16 %v344
      %v349 = vpack.c.b16 %v348, %v347
      %350 = vrot.lane.b32.xlu0 %v349, 96
      %v351 = vpop.permute.xlu0 %350
      %vm352 = vcmask 64512
      %v354 = vsel %vm352, %v349, 0
      %v357 = vsel %vm352, %v351, 0
      %359 = vmatpush.bf16.xpose.msra.mxu0 0
      %360 = vmatpush.bf16.xpose.msra.mxu0 0
      %361 = vmatpush.bf16.xpose.msra.mxu0 0
      %362 = vmatpush.bf16.xpose.msra.mxu0 0
      %363 = vmatpush.bf16.xpose.msra.mxu0 0
      %364 = vmatpush.bf16.xpose.msra.mxu0 0
      %365 = vmatpush.bf16.xpose.msra.mxu0 0
      %366 = vmatpush.bf16.xpose.msra.mxu0 %v357
      %367 = vmatmul.bf16.gmra.mxu0 %v354
      %v368 = vpop.f32.mrf.mxu0
      %v369 = vadd.f32 0.0, %v368
      %v370 = vpop.f32.mrf.mxu0
      %v371 = vadd.f32 0.0, %v370
      %372 = vdwg.mxu0
      %vm373 = vcmask 130048
      %v374 = vsel %vm373, %v369, -inf
      %375 = vmax.xlane.f32.xlu0 %v374
      %v376 = vpop.xlane.xlu0 %375
      %v377 = vsel %vm373, %v371, -inf
      %378 = vmax.xlane.f32.xlu0 %v377
      %v379 = vpop.xlane.xlu0 %378
      %v380 = vsub.f32 %v369, %v376
      %v381 = vsub.f32 %v371, %v379
      %v382 = vmul.f32 %v380, 1.442695
      %v383 = vpow.pop %v382
      %v384 = vmul.f32 %v381, 1.442695
      %v385 = vpow.pop %v384
      %v386 = vsel %vm373, %v383, 0.0
      %387 = vadd.xlane.f32.xlu0 %v386
      %v388 = vpop.xlane.xlu0 %387
      %v389 = vsel %vm373, %v385, 0.0
      %390 = vadd.xlane.f32.xlu0 %v389
      %v391 = vpop.xlane.xlu0 %390
      %v392 = vrcp.pop %v388
      %v393 = vrcp.pop %v391
      %v394 = vmul.f32 %v388, %v392
      %v395 = vmul.f32 %v391, %v393
      %v396 = vsub.f32 2.0, %v394
      %v397 = vsub.f32 2.0, %v395
      %v398 = vmul.f32 %v392, %v396
      %v399 = vmul.f32 %v393, %v397
      %v400 = vmul.f32 %v383, %v398
      %v401 = vmul.f32 %v385, %v399
      %v402 = vpack.c.bf16 %v400, %v400
      %v403 = vpack.c.bf16 %v401, %v401
      %v406 = vunpack.c.l.b16 %v402
      %v407 = vunpack.c.l.b16 %v403
      %v408 = vpack.c.b16 %v407, %v406
      %409 = vrot.lane.b32.xlu0 %v349, 64
      %v410 = vpop.permute.xlu0 %409
      %v413 = vsel %vm373, %v408, 0
      %415 = vmatpush.bf16.msra.mxu0 0
      %416 = vmatpush.bf16.msra.mxu0 0
      %417 = vmatpush.bf16.msra.mxu0 0
      %418 = vmatpush.bf16.msra.mxu0 0
      %419 = vmatpush.bf16.msra.mxu0 0
      %420 = vmatpush.bf16.msra.mxu0 0
      %421 = vmatpush.bf16.msra.mxu0 0
      %422 = vmatpush.bf16.msra.mxu0 %v410
      %423 = vmatmul.bf16.gmra.mxu0 %v413
      %v424 = vpop.f32.mrf.mxu0
      %v425 = vadd.f32 0.0, %v424
      %v426 = vpop.f32.mrf.mxu0
      %v427 = vadd.f32 0.0, %v426
      %428 = vdwg.mxu0
      %v429 = vpack.c.bf16 %v425, %v425
      %v430 = vpack.c.bf16 %v427, %v427
      %vm431 = vcmask 60416
      %432 = vst.msk [vmem:[#allocation4] sm:$0xf] %vm431, %v429
      %433 = vst.msk [vmem:[#allocation4 + $0x4] sm:$0xf] %vm431, %v430
      %v434 = vld [vmem:[#allocation3] sm:$0xf]
      %v435 = vld [vmem:[#allocation3 + $0x4] sm:$0xf]
      %v438 = vunpack.c.l.b16 %v434
      %v439 = vunpack.c.l.b16 %v435
      %v440 = vpack.c.b16 %v439, %v438
      %441 = vrot.lane.b32.xlu0 %v440, 120
      %v442 = vpop.permute.xlu0 %441
      %443 = vrot.lane.b32.xlu0 %v440, 88
      %v444 = vpop.permute.xlu0 %443
      %v446 = vsel %vm352, %v442, 0
      %v449 = vsel %vm352, %v444, 0
      %451 = vmatpush.bf16.xpose.msra.mxu0 0
      %452 = vmatpush.bf16.xpose.msra.mxu0 0
      %453 = vmatpush.bf16.xpose.msra.mxu0 0
      %454 = vmatpush.bf16.xpose.msra.mxu0 0
      %455 = vmatpush.bf16.xpose.msra.mxu0 0
      %456 = vmatpush.bf16.xpose.msra.mxu0 0
      %457 = vmatpush.bf16.xpose.msra.mxu0 0
      %458 = vmatpush.bf16.xpose.msra.mxu0 %v449
      %459 = vmatmul.bf16.gmra.mxu0 %v446
      %v460 = vpop.f32.mrf.mxu0
      %v461 = vadd.f32 0.0, %v460
      %v462 = vpop.f32.mrf.mxu0
      %v463 = vadd.f32 0.0, %v462
      %464 = vdwg.mxu0
      %v465 = vsel %vm373, %v461, -inf
      %466 = vmax.xlane.f32.xlu0 %v465
      %v467 = vpop.xlane.xlu0 %466
      %v468 = vsel %vm373, %v463, -inf
      %469 = vmax.xlane.f32.xlu0 %v468
      %v470 = vpop.xlane.xlu0 %469
      %v471 = vsub.f32 %v461, %v467
      %v472 = vsub.f32 %v463, %v470
      %v473 = vmul.f32 %v471, 1.442695
      %v474 = vpow.pop %v473
      %v475 = vmul.f32 %v472, 1.442695
      %v476 = vpow.pop %v475
      %v477 = vsel %vm373, %v474, 0.0
      %478 = vadd.xlane.f32.xlu0 %v477
      %v479 = vpop.xlane.xlu0 %478
      %v480 = vsel %vm373, %v476, 0.0
      %481 = vadd.xlane.f32.xlu0 %v480
      %v482 = vpop.xlane.xlu0 %481
      %v483 = vrcp.pop %v479
      %v484 = vrcp.pop %v482
      %v485 = vmul.f32 %v479, %v483
      %v486 = vmul.f32 %v482, %v484
      %v487 = vsub.f32 2.0, %v485
      %v488 = vsub.f32 2.0, %v486
      %v489 = vmul.f32 %v483, %v487
      %v490 = vmul.f32 %v484, %v488
      %v491 = vmul.f32 %v474, %v489
      %v492 = vmul.f32 %v476, %v490
      %v493 = vpack.c.bf16 %v491, %v491
      %v494 = vpack.c.bf16 %v492, %v492
      %v497 = vunpack.c.l.b16 %v493
      %v498 = vunpack.c.l.b16 %v494
      %v499 = vpack.c.b16 %v498, %v497
      %500 = vrot.lane.b32.xlu0 %v440, 56
      %v501 = vpop.permute.xlu0 %500
      %v504 = vsel %vm373, %v499, 0
      %506 = vmatpush.bf16.msra.mxu0 0
      %507 = vmatpush.bf16.msra.mxu0 0
      %508 = vmatpush.bf16.msra.mxu0 0
      %509 = vmatpush.bf16.msra.mxu0 0
      %510 = vmatpush.bf16.msra.mxu0 0
      %511 = vmatpush.bf16.msra.mxu0 0
      %512 = vmatpush.bf16.msra.mxu0 0
      %513 = vmatpush.bf16.msra.mxu0 %v501
      %514 = vmatmul.bf16.gmra.mxu0 %v504
      %v515 = vpop.f32.mrf.mxu0
      %v516 = vadd.f32 0.0, %v515
      %v517 = vpop.f32.mrf.mxu0
      %v518 = vadd.f32 0.0, %v517
      %519 = vdwg.mxu0
      %v520 = vpack.c.bf16 %v516, %v516
      %v521 = vpack.c.bf16 %v518, %v518
      %524 = vrot.lane.b32.xlu0 %v520, 8
      %v525 = vpop.permute.xlu0 %524
      %526 = vrot.lane.b32.xlu0 %v521, 8
      %v527 = vpop.permute.xlu0 %526
      %vm530 = vcmask 126016
      %531 = vst.msk [vmem:[#allocation4] sm:$0xf] %vm530, %v525
      %532 = vst.msk [vmem:[#allocation4 + $0x4] sm:$0xf] %vm530, %v527
      %v533 = vld [vmem:[#allocation3] sm:$0xf]
      %v534 = vld [vmem:[#allocation3 + $0x4] sm:$0xf]
      %v537 = vunpack.c.l.b16 %v533
      %v538 = vunpack.c.l.b16 %v534
      %v539 = vpack.c.b16 %v538, %v537
      %540 = vrot.lane.b32.xlu0 %v539, 112
      %v541 = vpop.permute.xlu0 %540
      %542 = vrot.lane.b32.xlu0 %v539, 80
      %v543 = vpop.permute.xlu0 %542
      %v545 = vsel %vm352, %v541, 0
      %v548 = vsel %vm352, %v543, 0
      %550 = vmatpush.bf16.xpose.msra.mxu0 0
      %551 = vmatpush.bf16.xpose.msra.mxu0 0
      %552 = vmatpush.bf16.xpose.msra.mxu0 0
      %553 = vmatpush.bf16.xpose.msra.mxu0 0
      %554 = vmatpush.bf16.xpose.msra.mxu0 0
      %555 = vmatpush.bf16.xpose.msra.mxu0 0
      %556 = vmatpush.bf16.xpose.msra.mxu0 0
      %557 = vmatpush.bf16.xpose.msra.mxu0 %v548
      %558 = vmatmul.bf16.gmra.mxu0 %v545
      %v559 = vpop.f32.mrf.mxu0
      %v560 = vadd.f32 0.0, %v559
      %v561 = vpop.f32.mrf.mxu0
      %v562 = vadd.f32 0.0, %v561
      %563 = vdwg.mxu0
      %v564 = vsel %vm373, %v560, -inf
      %565 = vmax.xlane.f32.xlu0 %v564
      %v566 = vpop.xlane.xlu0 %565
      %v567 = vsel %vm373, %v562, -inf
      %568 = vmax.xlane.f32.xlu0 %v567
      %v569 = vpop.xlane.xlu0 %568
      %v570 = vsub.f32 %v560, %v566
      %v571 = vsub.f32 %v562, %v569
      %v572 = vmul.f32 %v570, 1.442695
      %v573 = vpow.pop %v572
      %v574 = vmul.f32 %v571, 1.442695
      %v575 = vpow.pop %v574
      %v576 = vsel %vm373, %v573, 0.0
      %577 = vadd.xlane.f32.xlu0 %v576
      %v578 = vpop.xlane.xlu0 %577
      %v579 = vsel %vm373, %v575, 0.0
      %580 = vadd.xlane.f32.xlu0 %v579
      %v581 = vpop.xlane.xlu0 %580
      %v582 = vrcp.pop %v578
      %v583 = vrcp.pop %v581
      %v584 = vmul.f32 %v578, %v582
      %v585 = vmul.f32 %v581, %v583
      %v586 = vsub.f32 2.0, %v584
      %v587 = vsub.f32 2.0, %v585
      %v588 = vmul.f32 %v582, %v586
      %v589 = vmul.f32 %v583, %v587
      %v590 = vmul.f32 %v573, %v588
      %v591 = vmul.f32 %v575, %v589
      %v592 = vpack.c.bf16 %v590, %v590
      %v593 = vpack.c.bf16 %v591, %v591
      %v596 = vunpack.c.l.b16 %v592
      %v597 = vunpack.c.l.b16 %v593
      %v598 = vpack.c.b16 %v597, %v596
      %599 = vrot.lane.b32.xlu0 %v539, 48
      %v600 = vpop.permute.xlu0 %599
      %v603 = vsel %vm373, %v598, 0
      %605 = vmatpush.bf16.msra.mxu0 0
      %606 = vmatpush.bf16.msra.mxu0 0
      %607 = vmatpush.bf16.msra.mxu0 0
      %608 = vmatpush.bf16.msra.mxu0 0
      %609 = vmatpush.bf16.msra.mxu0 0
      %610 = vmatpush.bf16.msra.mxu0 0
      %611 = vmatpush.bf16.msra.mxu0 0
      %612 = vmatpush.bf16.msra.mxu0 %v600
      %613 = vmatmul.bf16.gmra.mxu0 %v603
      %v614 = vpop.f32.mrf.mxu0
      %v615 = vadd.f32 0.0, %v614
      %v616 = vpop.f32.mrf.mxu0
      %v617 = vadd.f32 0.0, %v616
      %618 = vdwg.mxu0
      %v619 = vpack.c.bf16 %v615, %v615
      %v620 = vpack.c.bf16 %v617, %v617
      %623 = vrot.lane.b32.xlu0 %v619, 16
      %v624 = vpop.permute.xlu0 %623
      %625 = vrot.lane.b32.xlu0 %v620, 16
      %v626 = vpop.permute.xlu0 %625
      %vm629 = vcmask 191616
      %630 = vst.msk [vmem:[#allocation4] sm:$0xf] %vm629, %v624
      %631 = vst.msk [vmem:[#allocation4 + $0x4] sm:$0xf] %vm629, %v626
      %v632 = vld [vmem:[#allocation3] sm:$0xf]
      %v633 = vld [vmem:[#allocation3 + $0x4] sm:$0xf]
      %v636 = vunpack.c.l.b16 %v632
      %v637 = vunpack.c.l.b16 %v633
      %v638 = vpack.c.b16 %v637, %v636
      %639 = vrot.lane.b32.xlu0 %v638, 104
      %v640 = vpop.permute.xlu0 %639
      %641 = vrot.lane.b32.xlu0 %v638, 72
      %v642 = vpop.permute.xlu0 %641
      %v644 = vsel %vm352, %v640, 0
      %v647 = vsel %vm352, %v642, 0
      %649 = vmatpush.bf16.xpose.msra.mxu0 0
      %650 = vmatpush.bf16.xpose.msra.mxu0 0
      %651 = vmatpush.bf16.xpose.msra.mxu0 0
      %652 = vmatpush.bf16.xpose.msra.mxu0 0
      %653 = vmatpush.bf16.xpose.msra.mxu0 0
      %654 = vmatpush.bf16.xpose.msra.mxu0 0
      %655 = vmatpush.bf16.xpose.msra.mxu0 0
      %656 = vmatpush.bf16.xpose.msra.mxu0 %v647
      %657 = vmatmul.bf16.gmra.mxu0 %v644
      %v658 = vpop.f32.mrf.mxu0
      %v659 = vadd.f32 0.0, %v658
      %v660 = vpop.f32.mrf.mxu0
      %v661 = vadd.f32 0.0, %v660
      %662 = vdwg.mxu0
      %v663 = vsel %vm373, %v659, -inf
      %664 = vmax.xlane.f32.xlu0 %v663
      %v665 = vpop.xlane.xlu0 %664
      %v666 = vsel %vm373, %v661, -inf
      %667 = vmax.xlane.f32.xlu0 %v666
      %v668 = vpop.xlane.xlu0 %667
      %v669 = vsub.f32 %v659, %v665
      %v670 = vsub.f32 %v661, %v668
      %v671 = vmul.f32 %v669, 1.442695
      %v672 = vpow.pop %v671
      %v673 = vmul.f32 %v670, 1.442695
      %v674 = vpow.pop %v673
      %v675 = vsel %vm373, %v672, 0.0
      %676 = vadd.xlane.f32.xlu0 %v675
      %v677 = vpop.xlane.xlu0 %676
      %v678 = vsel %vm373, %v674, 0.0
      %679 = vadd.xlane.f32.xlu0 %v678
      %v680 = vpop.xlane.xlu0 %679
      %v681 = vrcp.pop %v677
      %v682 = vrcp.pop %v680
      %v683 = vmul.f32 %v677, %v681
      %v684 = vmul.f32 %v680, %v682
      %v685 = vsub.f32 2.0, %v683
      %v686 = vsub.f32 2.0, %v684
      %v687 = vmul.f32 %v681, %v685
      %v688 = vmul.f32 %v682, %v686
      %v689 = vmul.f32 %v672, %v687
      %v690 = vmul.f32 %v674, %v688
      %v691 = vpack.c.bf16 %v689, %v689
      %v692 = vpack.c.bf16 %v690, %v690
      %v695 = vunpack.c.l.b16 %v691
      %v696 = vunpack.c.l.b16 %v692
      %v697 = vpack.c.b16 %v696, %v695
      %698 = vrot.lane.b32.xlu0 %v638, 40
      %v699 = vpop.permute.xlu0 %698
      %v702 = vsel %vm373, %v697, 0
      %704 = vmatpush.bf16.msra.mxu0 0
      %705 = vmatpush.bf16.msra.mxu0 0
      %706 = vmatpush.bf16.msra.mxu0 0
      %707 = vmatpush.bf16.msra.mxu0 0
      %708 = vmatpush.bf16.msra.mxu0 0
      %709 = vmatpush.bf16.msra.mxu0 0
      %710 = vmatpush.bf16.msra.mxu0 0
      %711 = vmatpush.bf16.msra.mxu0 %v699
      %712 = vmatmul.bf16.gmra.mxu0 %v702
      %v713 = vpop.f32.mrf.mxu0
      %v714 = vadd.f32 0.0, %v713
      %v715 = vpop.f32.mrf.mxu0
      %v716 = vadd.f32 0.0, %v715
      %717 = vdwg.mxu0
      %v718 = vpack.c.bf16 %v714, %v714
      %v719 = vpack.c.bf16 %v716, %v716
      %722 = vrot.lane.b32.xlu0 %v718, 24
      %v723 = vpop.permute.xlu0 %722
      %724 = vrot.lane.b32.xlu0 %v719, 24
      %v725 = vpop.permute.xlu0 %724
      %vm728 = vcmask 257216
      %729 = vst.msk [vmem:[#allocation4] sm:$0xf] %vm728, %v723
      %730 = vst.msk [vmem:[#allocation4 + $0x4] sm:$0xf] %vm728, %v725
      %v731 = vld [vmem:[#allocation4] sm:$0xf]
      %v732 = vld [vmem:[#allocation4 + $0x4] sm:$0xf]
      %v733 = vld [vmem:[%s4] sm:$0xf]
      %v734 = vld [vmem:[%s4 + $0x4] sm:$0xf]
      %v735 = vld [vmem:[%s4 + $0x8] sm:$0xf]
      %v736 = vld [vmem:[%s4 + $0xc] sm:$0xf]
      %v737 = vld [vmem:[%s5] sm:$0x1]
      %v739 = vperm.slane %v737, 0
      %v743 = vunpack.c.l.b16 %v731
      %v744 = vunpack.c.l.b16 %v732
      %v745 = vpack.c.b16 %v744, %v743
      %v750 = vunpack.c.l.b16 %v733
      %v751 = vunpack.c.l.b16 %v734
      %v752 = vunpack.c.l.b16 %v735
      %v753 = vunpack.c.l.b16 %v736
      %v754 = vpack.c.b16 %v751, %v750
      %v755 = vpack.c.b16 %v753, %v752
      %v759 = vsel %vm320, %v745, 0
      %761 = vmatpush.bf16.msra.mxu0 0
      %762 = vmatpush.bf16.msra.mxu0 0
      %763 = vmatpush.bf16.msra.mxu0 0
      %764 = vmatpush.bf16.msra.mxu0 0
      %765 = vmatpush.bf16.msra.mxu0 0
      %766 = vmatpush.bf16.msra.mxu0 0
      %767 = vmatpush.bf16.msra.mxu0 %v755
      %768 = vmatpush.bf16.msra.mxu0 %v754
      %769 = vmatmul.bf16.gmra.mxu0 %v759
      %v770 = vpop.f32.mrf.mxu0
      %v771 = vadd.f32 %v739, %v770
      %v772 = vpop.f32.mrf.mxu0
      %v773 = vadd.f32 %v739, %v772
      %774 = vdwg.mxu0
      %775 = vxpose.xlu0.b32.start [1/16] %v771, 128
      %776 = vxpose.xlu0.b32.cont [2/16] %v773, 128
      %777 = vxpose.xlu0.b32.cont [3/16] 0.0, 128
      %778 = vxpose.xlu0.b32.cont [4/16] 0.0, 128
      %779 = vxpose.xlu0.b32.cont [5/16] 0.0, 128
      %780 = vxpose.xlu0.b32.cont [6/16] 0.0, 128
      %781 = vxpose.xlu0.b32.cont [7/16] 0.0, 128
      %782 = vxpose.xlu0.b32.cont [8/16] 0.0, 128
      %783 = vxpose.xlu0.b32.cont [9/16] 0.0, 128
      %784 = vxpose.xlu0.b32.cont [10/16] 0.0, 128
      %785 = vxpose.xlu0.b32.cont [11/16] 0.0, 128
      %786 = vxpose.xlu0.b32.cont [12/16] 0.0, 128
      %787 = vxpose.xlu0.b32.cont [13/16] 0.0, 128
      %788 = vxpose.xlu0.b32.cont [14/16] 0.0, 128
      %789 = vxpose.xlu0.b32.cont [15/16] 0.0, 128
      %790 = vxpose.xlu0.b32.end [16/16] 0.0, 128
      %v791 = vpop.trf.xlu0
      %v792 = vpop.trf.xlu0
      %v793 = vpop.trf.xlu0
      %v794 = vpop.trf.xlu0
      %v795 = vpop.trf.xlu0
      %v796 = vpop.trf.xlu0
      %v797 = vpop.trf.xlu0
      %v798 = vpop.trf.xlu0
      %v799 = vpop.trf.xlu0
      %v800 = vpop.trf.xlu0
      %v801 = vpop.trf.xlu0
      %v802 = vpop.trf.xlu0
      %v803 = vpop.trf.xlu0
      %v804 = vpop.trf.xlu0
      %v805 = vpop.trf.xlu0
      %v806 = vpop.trf.xlu0
      %807 = vst.msk [vmem:[%s251] sm:$0xff] %vm373, %v791
      %808 = vst.msk [vmem:[%s251 + $0x8] sm:$0xff] %vm373, %v792
      %809 = vst.msk [vmem:[%s251 + $0x10] sm:$0xff] %vm373, %v793
      %810 = vst.msk [vmem:[%s251 + $0x18] sm:$0xff] %vm373, %v794
      %p811 = scmp.lt.s32.totalorder %s17, 1
      %s812 = scalar_select %p811, %s17, 1
      %s813 = smul.addr %s812, 4
      %s814 = smul.addr %s813, 8
      %s815 = scalar_lea.vmem %s6, %s814
      // Predicated region
      $region45: #{tpu_custom_call.1} parent=43 // pred_check
        %p816 = pneg %p166
      $region46: #{tpu_custom_call.1} parent=43 // pred_check_branch
        %818 = sbr.rel (%p816) target = $region48
      $region47: #{tpu_custom_call.1} parent=43 // pred_region
        _
      $region48: #{tpu_custom_call.1} parent=43 // pred_fallthru
        _
    $region44: #{tpu_custom_call.1} parent=5 // pred_fallthru
      _
    %p819 = scmp.le.s32.totalorder 2, %s12
    // Predicated region
    $region49: #{tpu_custom_call.1} parent=5 // pred_check
      %p820 = pneg %p819
    $region50: #{tpu_custom_call.1} parent=5 // pred_check_branch
      %822 = sbr.rel (%p820) target = $region52
    $region51: #{tpu_custom_call.1} parent=5 // pred_region
      %s823 = ssub.s32 %s12, 2
      // Predicated region
      $region53: #{tpu_custom_call.1} parent=51 // pred_check
        %p824 = pneg %p172
      $region54: #{tpu_custom_call.1} parent=51 // pred_check_branch
        %826 = sbr.rel (%p824) target = $region56
      $region55: #{tpu_custom_call.1} parent=51 // pred_region
        %p827 = scmp.lt.s32.totalorder %s18, 1
        %s828 = scalar_select %p827, %s18, 1
        %s829 = smul.addr %s828, 4
        %s830 = smul.addr %s829, 8
        %s831 = scalar_lea.vmem %s6, %s830
      $region56: #{tpu_custom_call.1} parent=51 // pred_fallthru
        _
    $region52: #{tpu_custom_call.1} parent=5 // pred_fallthru
      _
  $region6: #{tpu_custom_call.1} parent=0 // loop_footer
    %s16 = sadd.s32 1, %s12
  $region7: #{tpu_custom_call.1} parent=0 // loop_footer_branch
    %11 = sbr.rel target = $region3
  $region8: #{tpu_custom_call.1} parent=0 // loop_exit
    _

</llo_original>
